<compile_context>
chip_gen: v6e
topology: v6e:2x2x1
jax: 0.10.0
libtpu: 0.0.40
codegen_flags: <defaults>
</compile_context>

<pallas_src>
import functools
import math

import jax
import jax.numpy as jnp
from jax.experimental import pallas as pl
from jax.experimental.pallas import tpu as pltpu

EPS = 1e-5


def _sam_kernel(hw_total,
                x_ref, wf_ref, bf_ref, wg_ref, bg_ref, wh_ref, bh_ref,
                wo_ref, bo_ref, o_ref, att_ref, mean_ref, rstd_ref):
    p = pl.program_id(1)        # phase: 0 = energy/stats, 1 = output
    t = pl.program_id(2)        # HW tile index
    nt = pl.num_programs(2)

    @pl.when(jnp.logical_and(p == 0, t == 0))
    def _init():
        att_ref[...] = jnp.zeros_like(att_ref)
        mean_ref[...] = jnp.zeros_like(mean_ref)
        rstd_ref[...] = jnp.zeros_like(rstd_ref)

    @pl.when(p == 0)
    def _phase0():
        x = x_ref[...].astype(jnp.float32)                              # (C, TQ)
        fm = jnp.dot(wf_ref[...], x,
                     preferred_element_type=jnp.float32) + bf_ref[...]  # f(x)
        gm = jnp.dot(wg_ref[...], x,
                     preferred_element_type=jnp.float32) + bg_ref[...]  # g(x)
        # accumulate energy^T:  eT[j, i] = sum_k gm[j, k] * fm[i, k]
        att_ref[...] += jax.lax.dot_general(
            gm, fm, (((1,), (1,)), ((), ())),
            preferred_element_type=jnp.float32)
        # running per-channel stats for normal(x)
        mean_ref[...] += jnp.sum(x, axis=1, keepdims=True)
        rstd_ref[...] += jnp.sum(x * x, axis=1, keepdims=True)

    @pl.when(jnp.logical_and(p == 0, t == nt - 1))
    def _finalize():
        # instance-norm stats (torch unbiased variance; HW must be > 1).
        s = mean_ref[...]
        ss = rstd_ref[...]
        mean = s * (1.0 / hw_total)
        var = jnp.maximum(ss - hw_total * mean * mean, 0.0) / (hw_total - 1)
        mean_ref[...] = mean
        rstd_ref[...] = jax.lax.rsqrt(var + EPS)
        # softmax of energy^T along axis 0  ==  attention^T  (no transpose op)
        e = att_ref[...]
        m = jnp.max(e, axis=0, keepdims=True)
        pe = jnp.exp(e - m)
        att_ref[...] = pe / jnp.sum(pe, axis=0, keepdims=True)

    @pl.when(p == 1)
    def _phase1():
        x = x_ref[...].astype(jnp.float32)                              # (C, TQ)
        xn = (x - mean_ref[...]) * rstd_ref[...]                        # normal(x)
        hm = jnp.dot(wh_ref[...], xn,
                     preferred_element_type=jnp.float32) + bh_ref[...]  # h(normal(x))
        out = jnp.dot(att_ref[...], hm,
                      preferred_element_type=jnp.float32)               # att^T @ Hm
        out = jnp.dot(wo_ref[...], out,
                      preferred_element_type=jnp.float32) + bo_ref[...] # out_conv
        o_ref[...] = (out + x).astype(o_ref.dtype)                      # residual


def _tpu_vmem_capacity():
    try:
        return getattr(pltpu.get_tpu_info(), "vmem_capacity_bytes", None)
    except Exception:
        return None


def _pick_tq(hw, vmem_cap):
    # Generation-gated tile cap: bigger tiles on 128 MiB VMEM parts (v5e/v6e),
    # conservative on 64 MiB (v7x) / unknown.
    cap = 1024 if (vmem_cap is not None and vmem_cap > (64 << 20)) else 512
    if hw <= cap:
        return hw
    for cand in range(cap, 0, -128):      # lane dim must stay a multiple of 128
        if hw % cand == 0:
            return cand
    return hw                              # fallback: untiled (full extent is always legal)


def sam_forward(x_nchw, params, tq=None):
    B, C, H, W = x_nchw.shape
    HW = H * W
    x = x_nchw.reshape(B, C, HW)           # pure reshape, no transpose
    wf, bf, wg, bg, wh, bh, wo, bo = params

    vmem_cap = _tpu_vmem_capacity()
    if tq is None:
        tq = _pick_tq(HW, vmem_cap)
    nt = HW // tq

    def wspec():
        return pl.BlockSpec((C, C), lambda b, p, t: (0, 0))     # resident weights

    def bspec():
        return pl.BlockSpec((C, 1), lambda b, p, t: (0, 0))     # resident biases

    cp_kwargs = dict(dimension_semantics=("parallel", "arbitrary", "arbitrary"))
    if vmem_cap is not None and vmem_cap >= (64 << 20):
        # leave headroom below physical VMEM (v7x has only 64 MiB per core)
        cp_kwargs["vmem_limit_bytes"] = int(min(vmem_cap // 2, 64 << 20))

    cost = pl.CostEstimate(
        flops=12 * B * HW * C * C,                      # 6 matmuls of ~2*HW*C^2
        transcendentals=B * C * (C + 1),                # softmax exp + rsqrt
        bytes_accessed=3 * B * HW * C * x.dtype.itemsize + 4 * C * C * 4,
    )

    out = pl.pallas_call(
        functools.partial(_sam_kernel, HW),
        out_shape=jax.ShapeDtypeStruct((B, C, HW), x.dtype),
        grid_spec=pltpu.PrefetchScalarGridSpec(
            num_scalar_prefetch=0,
            grid=(B, 2, nt),
            in_specs=[
                pl.BlockSpec((None, C, tq), lambda b, p, t: (b, 0, t)),
                wspec(), bspec(),   # f
                wspec(), bspec(),   # g
                wspec(), bspec(),   # h
                wspec(), bspec(),   # out_conv
            ],
            # phase 0 parks the output window on tile 0 (never flushed there);
            # phase 1 writes tile t.  No garbage writebacks, no revisits.
            out_specs=pl.BlockSpec((None, C, tq), lambda b, p, t: (b, 0, t * p)),
            scratch_shapes=[
                pltpu.VMEM((C, C), jnp.float32),   # energy^T -> attention^T
                pltpu.VMEM((C, 1), jnp.float32),   # sum      -> mean
                pltpu.VMEM((C, 1), jnp.float32),   # sum sq   -> rstd
            ],
        ),
        compiler_params=pltpu.CompilerParams(**cp_kwargs),
        cost_estimate=cost,
    )(x, wf, bf, wg, bg, wh, bh, wo, bo)

    return out.reshape(B, C, H, W)


def sam_reference(x, params):
    # Pure-JAX mirror of the PyTorch SAM forward (NCHW), for correctness checks.
    B, C, H, W = x.shape
    HW = H * W
    wf, bf, wg, bg, wh, bh, wo, bo = params
    hp = jax.lax.Precision.HIGHEST

    xf = x.reshape(B, C, HW)
    mean = xf.mean(axis=2, keepdims=True)
    var = xf.var(axis=2, ddof=1, keepdims=True)
    xn = (xf - mean) / jnp.sqrt(var + EPS)          # normal(x)

    def conv(inp, w, b):
        return jnp.einsum('oc,bck->bok', w, inp, precision=hp) + b.reshape(1, C, 1)

    F_ = conv(xf, wf, bf)                                          # (B, C, HW)
    G_ = conv(xf, wg, bg)                                          # (B, C, HW)
    energy = jnp.einsum('bik,bjk->bij', F_, G_, precision=hp)      # (B, C, C)
    att = jax.nn.softmax(energy, axis=-1)
    H_ = conv(xn, wh, bh)                                          # (B, C, HW)
    out = jnp.einsum('bji,bjk->bik', att, H_, precision=hp)        # att^T @ H
    out = conv(out, wo, bo)
    return (out + xf).reshape(B, C, H, W)


def init_params(key, C):
    # PyTorch Conv2d default init for 1x1: uniform(-1/sqrt(C), 1/sqrt(C)).
    k = 1.0 / math.sqrt(C)
    keys = jax.random.split(key, 8)
    ps = []
    for i in range(4):
        w = jax.random.uniform(keys[2 * i], (C, C), jnp.float32, -k, k)
        b = jax.random.uniform(keys[2 * i + 1], (C, 1), jnp.float32, -k, k)
        ps += [w, b]
    return tuple(ps)


if __name__ == "__main__":
    key = jax.random.PRNGKey(0)
    kx, kp = jax.random.split(key)
    B, C, H, W = 2, 4, 16, 16
    x = jax.random.normal(kx, (B, C, H, W), jnp.float32)
    params = init_params(kp, C)

    out = sam_forward(x, params)
    out = jax.block_until_ready(out)

    ref = sam_reference(x, params)
    assert out.shape == (B, C, H, W)
    err = float(jnp.max(jnp.abs(out - ref)))
    assert jnp.allclose(out, ref, rtol=1e-3, atol=1e-3), err
    print("KERNEL_OK")
</pallas_src>

<mosaic_0001>
module attributes {stable_mosaic.version = 11 : i64} {
  func.func @_sam_kernel(%arg0: i32, %arg1: i32, %arg2: i32, %arg3: memref<1x4x256xf32, #tpu.memory_space<vmem>>, %arg4: memref<4x4xf32, #tpu.memory_space<vmem>>, %arg5: memref<4x1xf32, #tpu.memory_space<vmem>>, %arg6: memref<4x4xf32, #tpu.memory_space<vmem>>, %arg7: memref<4x1xf32, #tpu.memory_space<vmem>>, %arg8: memref<4x4xf32, #tpu.memory_space<vmem>>, %arg9: memref<4x1xf32, #tpu.memory_space<vmem>>, %arg10: memref<4x4xf32, #tpu.memory_space<vmem>>, %arg11: memref<4x1xf32, #tpu.memory_space<vmem>>, %arg12: memref<1x4x256xf32, #tpu.memory_space<vmem>>, %arg13: memref<4x4xf32, #tpu.memory_space<vmem>>, %arg14: memref<4x1xf32, #tpu.memory_space<vmem>>, %arg15: memref<4x1xf32, #tpu.memory_space<vmem>>) attributes {dimension_semantics = [#tpu.dimension_semantics<parallel>, #tpu.dimension_semantics<arbitrary>, #tpu.dimension_semantics<arbitrary>], iteration_bounds = array<i64: 2, 2, 1>, scalar_prefetch = 0 : i64, scratch_operands = 3 : i64, tpu.core_type = #tpu.core_type<tc>, window_params = [{transform_indices = @transform_0, window_bounds = array<i64: 1, 4, 256>}, {pipeline_mode = #tpu.pipeline_mode<synchronous>, transform_indices = @transform_1, window_bounds = array<i64: 4, 4>}, {pipeline_mode = #tpu.pipeline_mode<synchronous>, transform_indices = @transform_2, window_bounds = array<i64: 4, 1>}, {pipeline_mode = #tpu.pipeline_mode<synchronous>, transform_indices = @transform_3, window_bounds = array<i64: 4, 4>}, {pipeline_mode = #tpu.pipeline_mode<synchronous>, transform_indices = @transform_4, window_bounds = array<i64: 4, 1>}, {pipeline_mode = #tpu.pipeline_mode<synchronous>, transform_indices = @transform_5, window_bounds = array<i64: 4, 4>}, {pipeline_mode = #tpu.pipeline_mode<synchronous>, transform_indices = @transform_6, window_bounds = array<i64: 4, 1>}, {pipeline_mode = #tpu.pipeline_mode<synchronous>, transform_indices = @transform_7, window_bounds = array<i64: 4, 4>}, {pipeline_mode = #tpu.pipeline_mode<synchronous>, transform_indices = @transform_8, window_bounds = array<i64: 4, 1>}, {transform_indices = @transform_9, window_bounds = array<i64: 1, 4, 256>}]} {
    %c0_i32 = arith.constant 0 : i32
    %0 = arith.cmpi eq, %arg1, %c0_i32 : i32
    %c0_i32_0 = arith.constant 0 : i32
    %1 = arith.cmpi eq, %arg2, %c0_i32_0 : i32
    %2 = arith.andi %0, %1 : i1
    %3 = arith.extui %2 : i1 to i32
    %c0_i32_1 = arith.constant 0 : i32
    %4 = arith.cmpi ne, %3, %c0_i32_1 : i32
    scf.if %4 {
      %cst = arith.constant 0.000000e+00 : f32
      %16 = vector.broadcast %cst : f32 to vector<4x4xf32>
      %c0 = arith.constant 0 : index
      %c0_8 = arith.constant 0 : index
      %17 = vector.load %arg13[%c0, %c0_8] : memref<4x4xf32, #tpu.memory_space<vmem>>, vector<4x4xf32>
      tpu.vector_store %arg13[%c0, %c0_8], %16 {strides = array<i32>} : memref<4x4xf32, #tpu.memory_space<vmem>>, vector<4x4xf32>,
      %cst_9 = arith.constant 0.000000e+00 : f32
      %18 = vector.broadcast %cst_9 : f32 to vector<4x1xf32>
      %c0_10 = arith.constant 0 : index
      %c0_11 = arith.constant 0 : index
      %19 = vector.load %arg14[%c0_10, %c0_11] : memref<4x1xf32, #tpu.memory_space<vmem>>, vector<4x1xf32>
      tpu.vector_store %arg14[%c0_10, %c0_11], %18 {strides = array<i32>} : memref<4x1xf32, #tpu.memory_space<vmem>>, vector<4x1xf32>,
      %cst_12 = arith.constant 0.000000e+00 : f32
      %20 = vector.broadcast %cst_12 : f32 to vector<4x1xf32>
      %c0_13 = arith.constant 0 : index
      %c0_14 = arith.constant 0 : index
      %21 = vector.load %arg15[%c0_13, %c0_14] : memref<4x1xf32, #tpu.memory_space<vmem>>, vector<4x1xf32>
      tpu.vector_store %arg15[%c0_13, %c0_14], %20 {strides = array<i32>} : memref<4x1xf32, #tpu.memory_space<vmem>>, vector<4x1xf32>,
    } else {
    }
    %c0_i32_2 = arith.constant 0 : i32
    %5 = arith.cmpi eq, %arg1, %c0_i32_2 : i32
    %6 = arith.extui %5 : i1 to i32
    %c0_i32_3 = arith.constant 0 : i32
    %7 = arith.cmpi ne, %6, %c0_i32_3 : i32
    scf.if %7 {
      %c0 = arith.constant 0 : index
      %c0_8 = arith.constant 0 : index
      %c0_9 = arith.constant 0 : index
      %16 = vector.load %arg3[%c0, %c0_8, %c0_9] : memref<1x4x256xf32, #tpu.memory_space<vmem>>, vector<1x4x256xf32>
      %17 = vector.shape_cast %16 : vector<1x4x256xf32> to vector<4x256xf32>
      %c0_10 = arith.constant 0 : index
      %c0_11 = arith.constant 0 : index
      %18 = vector.load %arg4[%c0_10, %c0_11] : memref<4x4xf32, #tpu.memory_space<vmem>>, vector<4x4xf32>
      %cst = arith.constant dense<0.000000e+00> : vector<4x256xf32>
      %19 = tpu.matmul %18, %17, %cst {dimension_numbers = #tpu.dot_dimension_numbers<[1], [0], [0], [1], [0, 0, 1, 1], [], []>} : vector<4x4xf32>, vector<4x256xf32>, vector<4x256xf32> -> vector<4x256xf32>
      %c0_12 = arith.constant 0 : index
      %c0_13 = arith.constant 0 : index
      %20 = vector.load %arg5[%c0_12, %c0_13] : memref<4x1xf32, #tpu.memory_space<vmem>>, vector<4x1xf32>
      %21 = vector.broadcast %20 : vector<4x1xf32> to vector<4x256xf32>
      %22 = arith.addf %19, %21 : vector<4x256xf32>
      %c0_14 = arith.constant 0 : index
      %c0_15 = arith.constant 0 : index
      %23 = vector.load %arg6[%c0_14, %c0_15] : memref<4x4xf32, #tpu.memory_space<vmem>>, vector<4x4xf32>
      %cst_16 = arith.constant dense<0.000000e+00> : vector<4x256xf32>
      %24 = tpu.matmul %23, %17, %cst_16 {dimension_numbers = #tpu.dot_dimension_numbers<[1], [0], [0], [1], [0, 0, 1, 1], [], []>} : vector<4x4xf32>, vector<4x256xf32>, vector<4x256xf32> -> vector<4x256xf32>
      %c0_17 = arith.constant 0 : index
      %c0_18 = arith.constant 0 : index
      %25 = vector.load %arg7[%c0_17, %c0_18] : memref<4x1xf32, #tpu.memory_space<vmem>>, vector<4x1xf32>
      %26 = vector.broadcast %25 : vector<4x1xf32> to vector<4x256xf32>
      %27 = arith.addf %24, %26 : vector<4x256xf32>
      %c0_19 = arith.constant 0 : index
      %c0_20 = arith.constant 0 : index
      %28 = vector.load %arg13[%c0_19, %c0_20] : memref<4x4xf32, #tpu.memory_space<vmem>>, vector<4x4xf32>
      %cst_21 = arith.constant dense<0.000000e+00> : vector<4x4xf32>
      %29 = tpu.matmul %27, %22, %cst_21 {dimension_numbers = #tpu.dot_dimension_numbers<[1], [1], [0], [0], [0, 0, 1, 0], [], []>} : vector<4x256xf32>, vector<4x256xf32>, vector<4x4xf32> -> vector<4x4xf32>
      %30 = arith.addf %28, %29 : vector<4x4xf32>
      %c0_22 = arith.constant 0 : index
      %c0_23 = arith.constant 0 : index
      %31 = vector.load %arg13[%c0_22, %c0_23] : memref<4x4xf32, #tpu.memory_space<vmem>>, vector<4x4xf32>
      tpu.vector_store %arg13[%c0_22, %c0_23], %30 {strides = array<i32>} : memref<4x4xf32, #tpu.memory_space<vmem>>, vector<4x4xf32>,
      %c0_24 = arith.constant 0 : index
      %c0_25 = arith.constant 0 : index
      %32 = vector.load %arg14[%c0_24, %c0_25] : memref<4x1xf32, #tpu.memory_space<vmem>>, vector<4x1xf32>
      %cst_26 = arith.constant dense<0.000000e+00> : vector<4xf32>
      %33 = vector.multi_reduction <add>, %17, %cst_26 [1] : vector<4x256xf32> to vector<4xf32>
      %34 = vector.shape_cast %33 : vector<4xf32> to vector<4x1xf32>
      %35 = arith.addf %32, %34 : vector<4x1xf32>
      %c0_27 = arith.constant 0 : index
      %c0_28 = arith.constant 0 : index
      %36 = vector.load %arg14[%c0_27, %c0_28] : memref<4x1xf32, #tpu.memory_space<vmem>>, vector<4x1xf32>
      tpu.vector_store %arg14[%c0_27, %c0_28], %35 {strides = array<i32>} : memref<4x1xf32, #tpu.memory_space<vmem>>, vector<4x1xf32>,
      %c0_29 = arith.constant 0 : index
      %c0_30 = arith.constant 0 : index
      %37 = vector.load %arg15[%c0_29, %c0_30] : memref<4x1xf32, #tpu.memory_space<vmem>>, vector<4x1xf32>
      %38 = arith.mulf %17, %17 : vector<4x256xf32>
      %cst_31 = arith.constant dense<0.000000e+00> : vector<4xf32>
      %39 = vector.multi_reduction <add>, %38, %cst_31 [1] : vector<4x256xf32> to vector<4xf32>
      %40 = vector.shape_cast %39 : vector<4xf32> to vector<4x1xf32>
      %41 = arith.addf %37, %40 : vector<4x1xf32>
      %c0_32 = arith.constant 0 : index
      %c0_33 = arith.constant 0 : index
      %42 = vector.load %arg15[%c0_32, %c0_33] : memref<4x1xf32, #tpu.memory_space<vmem>>, vector<4x1xf32>
      tpu.vector_store %arg15[%c0_32, %c0_33], %41 {strides = array<i32>} : memref<4x1xf32, #tpu.memory_space<vmem>>, vector<4x1xf32>,
    } else {
    }
    %c0_i32_4 = arith.constant 0 : i32
    %8 = arith.cmpi eq, %arg1, %c0_i32_4 : i32
    %c0_i32_5 = arith.constant 0 : i32
    %9 = arith.cmpi eq, %arg2, %c0_i32_5 : i32
    %10 = arith.andi %8, %9 : i1
    %11 = arith.extui %10 : i1 to i32
    %c0_i32_6 = arith.constant 0 : i32
    %12 = arith.cmpi ne, %11, %c0_i32_6 : i32
    scf.if %12 {
      %c0 = arith.constant 0 : index
      %c0_8 = arith.constant 0 : index
      %16 = vector.load %arg14[%c0, %c0_8] : memref<4x1xf32, #tpu.memory_space<vmem>>, vector<4x1xf32>
      %c0_9 = arith.constant 0 : index
      %c0_10 = arith.constant 0 : index
      %17 = vector.load %arg15[%c0_9, %c0_10] : memref<4x1xf32, #tpu.memory_space<vmem>>, vector<4x1xf32>
      %cst = arith.constant 3.906250e-03 : f32
      %18 = vector.broadcast %cst : f32 to vector<4x1xf32>
      %19 = arith.mulf %16, %18 : vector<4x1xf32>
      %cst_11 = arith.constant 2.560000e+02 : f32
      %20 = vector.broadcast %cst_11 : f32 to vector<4x1xf32>
      %21 = arith.mulf %20, %19 : vector<4x1xf32>
      %22 = arith.mulf %21, %19 : vector<4x1xf32>
      %23 = arith.subf %17, %22 : vector<4x1xf32>
      %cst_12 = arith.constant 0.000000e+00 : f32
      %24 = vector.broadcast %cst_12 : f32 to vector<4x1xf32>
      %25 = arith.maximumf %23, %24 : vector<4x1xf32>
      %cst_13 = arith.constant 2.550000e+02 : f32
      %26 = vector.broadcast %cst_13 : f32 to vector<4x1xf32>
      %27 = arith.divf %25, %26 : vector<4x1xf32>
      %c0_14 = arith.constant 0 : index
      %c0_15 = arith.constant 0 : index
      %28 = vector.load %arg14[%c0_14, %c0_15] : memref<4x1xf32, #tpu.memory_space<vmem>>, vector<4x1xf32>
      tpu.vector_store %arg14[%c0_14, %c0_15], %19 {strides = array<i32>} : memref<4x1xf32, #tpu.memory_space<vmem>>, vector<4x1xf32>,
      %cst_16 = arith.constant 9.99999974E-6 : f32
      %29 = vector.broadcast %cst_16 : f32 to vector<4x1xf32>
      %30 = arith.addf %27, %29 : vector<4x1xf32>
      %31 = math.rsqrt %30 : vector<4x1xf32>
      %c0_17 = arith.constant 0 : index
      %c0_18 = arith.constant 0 : index
      %32 = vector.load %arg15[%c0_17, %c0_18] : memref<4x1xf32, #tpu.memory_space<vmem>>, vector<4x1xf32>
      tpu.vector_store %arg15[%c0_17, %c0_18], %31 {strides = array<i32>} : memref<4x1xf32, #tpu.memory_space<vmem>>, vector<4x1xf32>,
      %c0_19 = arith.constant 0 : index
      %c0_20 = arith.constant 0 : index
      %33 = vector.load %arg13[%c0_19, %c0_20] : memref<4x4xf32, #tpu.memory_space<vmem>>, vector<4x4xf32>
      %cst_21 = arith.constant dense<0xFF800000> : vector<4xf32>
      %34 = vector.multi_reduction <maximumf>, %33, %cst_21 [0] : vector<4x4xf32> to vector<4xf32>
      %35 = vector.shape_cast %34 : vector<4xf32> to vector<1x4xf32>
      %36 = vector.broadcast %35 : vector<1x4xf32> to vector<4x4xf32>
      %37 = arith.subf %33, %36 : vector<4x4xf32>
      %38 = math.exp %37 : vector<4x4xf32>
      %cst_22 = arith.constant dense<0.000000e+00> : vector<4xf32>
      %39 = vector.multi_reduction <add>, %38, %cst_22 [0] : vector<4x4xf32> to vector<4xf32>
      %40 = vector.shape_cast %39 : vector<4xf32> to vector<1x4xf32>
      %41 = vector.broadcast %40 : vector<1x4xf32> to vector<4x4xf32>
      %42 = arith.divf %38, %41 : vector<4x4xf32>
      %c0_23 = arith.constant 0 : index
      %c0_24 = arith.constant 0 : index
      %43 = vector.load %arg13[%c0_23, %c0_24] : memref<4x4xf32, #tpu.memory_space<vmem>>, vector<4x4xf32>
      tpu.vector_store %arg13[%c0_23, %c0_24], %42 {strides = array<i32>} : memref<4x4xf32, #tpu.memory_space<vmem>>, vector<4x4xf32>,
    } else {
    }
    %c1_i32 = arith.constant 1 : i32
    %13 = arith.cmpi eq, %arg1, %c1_i32 : i32
    %14 = arith.extui %13 : i1 to i32
    %c0_i32_7 = arith.constant 0 : i32
    %15 = arith.cmpi ne, %14, %c0_i32_7 : i32
    scf.if %15 {
      %c0 = arith.constant 0 : index
      %c0_8 = arith.constant 0 : index
      %c0_9 = arith.constant 0 : index
      %16 = vector.load %arg3[%c0, %c0_8, %c0_9] : memref<1x4x256xf32, #tpu.memory_space<vmem>>, vector<1x4x256xf32>
      %17 = vector.shape_cast %16 : vector<1x4x256xf32> to vector<4x256xf32>
      %c0_10 = arith.constant 0 : index
      %c0_11 = arith.constant 0 : index
      %18 = vector.load %arg14[%c0_10, %c0_11] : memref<4x1xf32, #tpu.memory_space<vmem>>, vector<4x1xf32>
      %19 = vector.broadcast %18 : vector<4x1xf32> to vector<4x256xf32>
      %20 = arith.subf %17, %19 : vector<4x256xf32>
      %c0_12 = arith.constant 0 : index
      %c0_13 = arith.constant 0 : index
      %21 = vector.load %arg15[%c0_12, %c0_13] : memref<4x1xf32, #tpu.memory_space<vmem>>, vector<4x1xf32>
      %22 = vector.broadcast %21 : vector<4x1xf32> to vector<4x256xf32>
      %23 = arith.mulf %20, %22 : vector<4x256xf32>
      %c0_14 = arith.constant 0 : index
      %c0_15 = arith.constant 0 : index
      %24 = vector.load %arg8[%c0_14, %c0_15] : memref<4x4xf32, #tpu.memory_space<vmem>>, vector<4x4xf32>
      %cst = arith.constant dense<0.000000e+00> : vector<4x256xf32>
      %25 = tpu.matmul %24, %23, %cst {dimension_numbers = #tpu.dot_dimension_numbers<[1], [0], [0], [1], [0, 0, 1, 1], [], []>} : vector<4x4xf32>, vector<4x256xf32>, vector<4x256xf32> -> vector<4x256xf32>
      %c0_16 = arith.constant 0 : index
      %c0_17 = arith.constant 0 : index
      %26 = vector.load %arg9[%c0_16, %c0_17] : memref<4x1xf32, #tpu.memory_space<vmem>>, vector<4x1xf32>
      %27 = vector.broadcast %26 : vector<4x1xf32> to vector<4x256xf32>
      %28 = arith.addf %25, %27 : vector<4x256xf32>
      %c0_18 = arith.constant 0 : index
      %c0_19 = arith.constant 0 : index
      %29 = vector.load %arg13[%c0_18, %c0_19] : memref<4x4xf32, #tpu.memory_space<vmem>>, vector<4x4xf32>
      %cst_20 = arith.constant dense<0.000000e+00> : vector<4x256xf32>
      %30 = tpu.matmul %29, %28, %cst_20 {dimension_numbers = #tpu.dot_dimension_numbers<[1], [0], [0], [1], [0, 0, 1, 1], [], []>} : vector<4x4xf32>, vector<4x256xf32>, vector<4x256xf32> -> vector<4x256xf32>
      %c0_21 = arith.constant 0 : index
      %c0_22 = arith.constant 0 : index
      %31 = vector.load %arg10[%c0_21, %c0_22] : memref<4x4xf32, #tpu.memory_space<vmem>>, vector<4x4xf32>
      %cst_23 = arith.constant dense<0.000000e+00> : vector<4x256xf32>
      %32 = tpu.matmul %31, %30, %cst_23 {dimension_numbers = #tpu.dot_dimension_numbers<[1], [0], [0], [1], [0, 0, 1, 1], [], []>} : vector<4x4xf32>, vector<4x256xf32>, vector<4x256xf32> -> vector<4x256xf32>
      %c0_24 = arith.constant 0 : index
      %c0_25 = arith.constant 0 : index
      %33 = vector.load %arg11[%c0_24, %c0_25] : memref<4x1xf32, #tpu.memory_space<vmem>>, vector<4x1xf32>
      %34 = vector.broadcast %33 : vector<4x1xf32> to vector<4x256xf32>
      %35 = arith.addf %32, %34 : vector<4x256xf32>
      %36 = arith.addf %35, %17 : vector<4x256xf32>
      %c0_26 = arith.constant 0 : index
      %c0_27 = arith.constant 0 : index
      %c0_28 = arith.constant 0 : index
      %37 = vector.load %arg12[%c0_26, %c0_27, %c0_28] : memref<1x4x256xf32, #tpu.memory_space<vmem>>, vector<1x4x256xf32>
      %38 = vector.shape_cast %37 : vector<1x4x256xf32> to vector<4x256xf32>
      %39 = vector.shape_cast %36 : vector<4x256xf32> to vector<1x4x256xf32>
      tpu.vector_store %arg12[%c0_26, %c0_27, %c0_28], %39 {strides = array<i32>} : memref<1x4x256xf32, #tpu.memory_space<vmem>>, vector<1x4x256xf32>,
    } else {
    }
    return
  }
  func.func @transform_0(%arg0: i32, %arg1: i32, %arg2: i32) -> (i32, i32, i32) {
    %c0_i32 = arith.constant 0 : i32
    %c0_i32_0 = arith.constant 0 : i32
    return %arg0, %c0_i32, %arg2 : i32, i32, i32
  }
  func.func @transform_1(%arg0: i32, %arg1: i32, %arg2: i32) -> (i32, i32) {
    %c0_i32 = arith.constant 0 : i32
    %c0_i32_0 = arith.constant 0 : i32
    %c0_i32_1 = arith.constant 0 : i32
    return %c0_i32, %c0_i32_0 : i32, i32
  }
  func.func @transform_2(%arg0: i32, %arg1: i32, %arg2: i32) -> (i32, i32) {
    %c0_i32 = arith.constant 0 : i32
    %c0_i32_0 = arith.constant 0 : i32
    %c0_i32_1 = arith.constant 0 : i32
    return %c0_i32, %c0_i32_0 : i32, i32
  }
  func.func @transform_3(%arg0: i32, %arg1: i32, %arg2: i32) -> (i32, i32) {
    %c0_i32 = arith.constant 0 : i32
    %c0_i32_0 = arith.constant 0 : i32
    %c0_i32_1 = arith.constant 0 : i32
    return %c0_i32, %c0_i32_0 : i32, i32
  }
  func.func @transform_4(%arg0: i32, %arg1: i32, %arg2: i32) -> (i32, i32) {
    %c0_i32 = arith.constant 0 : i32
    %c0_i32_0 = arith.constant 0 : i32
    %c0_i32_1 = arith.constant 0 : i32
    return %c0_i32, %c0_i32_0 : i32, i32
  }
  func.func @transform_5(%arg0: i32, %arg1: i32, %arg2: i32) -> (i32, i32) {
    %c0_i32 = arith.constant 0 : i32
    %c0_i32_0 = arith.constant 0 : i32
    %c0_i32_1 = arith.constant 0 : i32
    return %c0_i32, %c0_i32_0 : i32, i32
  }
  func.func @transform_6(%arg0: i32, %arg1: i32, %arg2: i32) -> (i32, i32) {
    %c0_i32 = arith.constant 0 : i32
    %c0_i32_0 = arith.constant 0 : i32
    %c0_i32_1 = arith.constant 0 : i32
    return %c0_i32, %c0_i32_0 : i32, i32
  }
  func.func @transform_7(%arg0: i32, %arg1: i32, %arg2: i32) -> (i32, i32) {
    %c0_i32 = arith.constant 0 : i32
    %c0_i32_0 = arith.constant 0 : i32
    %c0_i32_1 = arith.constant 0 : i32
    return %c0_i32, %c0_i32_0 : i32, i32
  }
  func.func @transform_8(%arg0: i32, %arg1: i32, %arg2: i32) -> (i32, i32) {
    %c0_i32 = arith.constant 0 : i32
    %c0_i32_0 = arith.constant 0 : i32
    %c0_i32_1 = arith.constant 0 : i32
    return %c0_i32, %c0_i32_0 : i32, i32
  }
  func.func @transform_9(%arg0: i32, %arg1: i32, %arg2: i32) -> (i32, i32, i32) {
    %0 = arith.muli %arg2, %arg1 : i32
    %c0_i32 = arith.constant 0 : i32
    %c0_i32_0 = arith.constant 0 : i32
    return %arg0, %c0_i32, %0 : i32, i32, i32
  }
}

</mosaic_0001>

<llo_original>
// kernel: tpu_custom_call.1
$region0: #{tpu_custom_call.1}
  #allocation0 [shape = 'u32[]', space=smem, size = 0x4, offset = 0x4, fixed_abs, tag = 'smem constant byte address 0x4 - core index']
  #allocation1 [shape = 'u32[144,128]{1,0:T(1,128)}', space=vmem, size = 0x12000, scoped, tag = 'internal scratch']
  #allocation2 [shape = 'f32[4,4]{1,0:T(4,128)}', space=vmem, size = 0x800, scoped, tag = 'scratch operand']
  #allocation3 [shape = 'f32[4,1]{1,0:T(4,128)}', space=vmem, size = 0x800, scoped, tag = 'scratch operand']
  #allocation4 [shape = 'f32[4,1]{1,0:T(4,128)}', space=vmem, size = 0x800, scoped, tag = 'scratch operand']
  %s0 = inlined_call_operand.vmem [shape: f32[2,4,256], index: 0, kind: input, shape index: {}]
  %s1 = inlined_call_operand.vmem [shape: f32[4,4], index: 1, kind: input, shape index: {}]
  %s2 = inlined_call_operand.vmem [shape: f32[4,1], index: 2, kind: input, shape index: {}]
  %s3 = inlined_call_operand.vmem [shape: f32[4,4], index: 3, kind: input, shape index: {}]
  %s4 = inlined_call_operand.vmem [shape: f32[4,1], index: 4, kind: input, shape index: {}]
  %s5 = inlined_call_operand.vmem [shape: f32[4,4], index: 5, kind: input, shape index: {}]
  %s6 = inlined_call_operand.vmem [shape: f32[4,1], index: 6, kind: input, shape index: {}]
  %s7 = inlined_call_operand.vmem [shape: f32[4,4], index: 7, kind: input, shape index: {}]
  %s8 = inlined_call_operand.vmem [shape: f32[4,1], index: 8, kind: input, shape index: {}]
  %s9 = inlined_call_operand.hbm [shape: f32[2,4,256], index: 9, kind: output, shape index: {}]
  %s10 = sld [smem:[#allocation0]]
  $region85: #{tpu_custom_call.1} parent=0
    _
  %s12 = ssub.s32 1, %s10
  %s13 = scalar_select 0, %s12, %s10
  $region1: #{tpu_custom_call.1} parent=0
    #allocation5 [shape = 'u8[8192]{0}', space=vmem, size = 0x2000, scoped, tag = 'output window, operand 0']
    #allocation6 [shape = 's32[2]{0}', space=sflag, size = 0x8, scoped, tag = 'scoped memory for tpu_custom_call.1']
    %14 = vsyncpa [#allocation6], 0
    %s15 = scalar_lea.sflag [#allocation6], 1
    %16 = vsyncpa %s15, 0
    loop: start=0, step=1, limit=6
    $region2: #{tpu_custom_call.1} parent=1 // loop_pre_header
      _
    $region3: #{tpu_custom_call.1} parent=1 // loop_header
      %s18 = sphi 0, %s22
      %p19 = scmp.ge.s32.totalorder %s18, 6
      %s25 = sphi 0, %s44
      %s26 = sphi 0, %s40
      %s27 = sphi 0, %s36
      %s28 = sphi 0, %s25
      %s29 = sphi 0, %s26
      %s30 = sphi 0, %s27
      %s31 = sphi 0, %s28
      %s32 = sphi 0, %s29
      %s33 = sphi 0, %s30
      %s49 = sphi 0, %s51
      %s52 = sphi 0, %s49
      %s53 = sphi 0, %s52
      %s69 = sphi 0, %s53
      %s73 = sphi 0, %s73
      %s75 = sphi 0, %s73
      %s76 = sphi 0, %s75
      %s90 = sphi 0, %s76
      %s94 = sphi 0, %s94
      %s96 = sphi 0, %s94
      %s97 = sphi 0, %s96
      %s111 = sphi 0, %s97
      %s115 = sphi 0, %s115
      %s117 = sphi 0, %s115
      %s118 = sphi 0, %s117
      %s132 = sphi 0, %s118
      %s136 = sphi 0, %s136
      %s138 = sphi 0, %s136
      %s139 = sphi 0, %s138
      %s153 = sphi 0, %s139
      %s157 = sphi 0, %s157
      %s159 = sphi 0, %s157
      %s160 = sphi 0, %s159
      %s174 = sphi 0, %s160
      %s178 = sphi 0, %s178
      %s180 = sphi 0, %s178
      %s181 = sphi 0, %s180
      %s195 = sphi 0, %s181
      %s199 = sphi 0, %s199
      %s201 = sphi 0, %s199
      %s202 = sphi 0, %s201
      %s216 = sphi 0, %s202
      %s220 = sphi 0, %s220
      %s222 = sphi 0, %s220
      %s223 = sphi 0, %s222
      %s237 = sphi 0, %s223
      %s247 = sphi 0, %s249
      %s250 = sphi 0, %s247
      %s251 = sphi 0, %s250
      %s267 = sphi 0, %s251
    $region4: #{tpu_custom_call.1} parent=1 // loop_header_branch
      %21 = sbr.rel (%p19) target = $region8
    $region5: #{tpu_custom_call.1} parent=1 // loop_body
      %s23 = ssub.s32 %s18, 1
      %s24 = ssub.s32 %s18, 2
      %s34 = sadd.s32 1, %s27
      %p35 = scmp.ge.s32.totalorder %s34, 1
      %s36 = scalar_select %p35, 0, %s34
      %s37 = sadd.s32 1, %s26
      %s38 = scalar_select %p35, %s37, %s26
      %p39 = scmp.ge.s32.totalorder %s38, 2
      %s40 = scalar_select %p39, 0, %s38
      %s41 = sadd.s32 1, %s25
      %s42 = scalar_select %p39, %s41, %s25
      %p43 = scmp.ge.s32.totalorder %s42, 2
      %s44 = scalar_select %p43, 0, %s42
      %s45 = ssub.s32 %s25, %s44
      %s46 = ssub.s32 %s27, %s36
      %s47 = sor.u32 %s45, %s46
      %p48 = scmp.eq.s32.totalorder %s47, 0
      %s50 = sadd.s32 %s49, 1
      %s51 = scalar_select %p48, %s49, %s50
      %p54 = pneg %p48
      %p55 = scmp.eq.s32.totalorder %s18, 3
      %p56 = por %p54, %p55
      %p57 = scmp.ne.s32.totalorder %s49, %s52
      %p58 = scmp.eq.s32.totalorder %s18, 0
      %p59 = por %p57, %p58
      %p60 = scmp.ne.s32.totalorder %s49, %s52
      %p61 = scmp.eq.s32.totalorder %s23, 3
      %p62 = por %p60, %p61
      %p63 = scmp.ne.s32.totalorder %s52, %s53
      %p64 = scmp.eq.s32.totalorder %s23, 0
      %p65 = por %p63, %p64
      %p66 = scmp.ne.s32.totalorder %s52, %s53
      %p67 = scmp.eq.s32.totalorder %s24, 3
      %p68 = por %p66, %p67
      %p70 = scmp.ne.s32.totalorder %s53, %s69
      %p71 = scmp.eq.s32.totalorder %s24, 0
      %p72 = por %p70, %p71
      %s74 = sadd.s32 %s73, 1
      %p77 = scmp.eq.s32.totalorder %s18, 3
      %p78 = scmp.ne.s32.totalorder %s73, %s75
      %p79 = scmp.eq.s32.totalorder %s18, 0
      %p80 = por %p78, %p79
      %p81 = scmp.ne.s32.totalorder %s73, %s75
      %p82 = scmp.eq.s32.totalorder %s23, 3
      %p83 = por %p81, %p82
      %p84 = scmp.ne.s32.totalorder %s75, %s76
      %p85 = scmp.eq.s32.totalorder %s23, 0
      %p86 = por %p84, %p85
      %p87 = scmp.ne.s32.totalorder %s75, %s76
      %p88 = scmp.eq.s32.totalorder %s24, 3
      %p89 = por %p87, %p88
      %p91 = scmp.ne.s32.totalorder %s76, %s90
      %p92 = scmp.eq.s32.totalorder %s24, 0
      %p93 = por %p91, %p92
      %s95 = sadd.s32 %s94, 1
      %p98 = scmp.eq.s32.totalorder %s18, 3
      %p99 = scmp.ne.s32.totalorder %s94, %s96
      %p100 = scmp.eq.s32.totalorder %s18, 0
      %p101 = por %p99, %p100
      %p102 = scmp.ne.s32.totalorder %s94, %s96
      %p103 = scmp.eq.s32.totalorder %s23, 3
      %p104 = por %p102, %p103
      %p105 = scmp.ne.s32.totalorder %s96, %s97
      %p106 = scmp.eq.s32.totalorder %s23, 0
      %p107 = por %p105, %p106
      %p108 = scmp.ne.s32.totalorder %s96, %s97
      %p109 = scmp.eq.s32.totalorder %s24, 3
      %p110 = por %p108, %p109
      %p112 = scmp.ne.s32.totalorder %s97, %s111
      %p113 = scmp.eq.s32.totalorder %s24, 0
      %p114 = por %p112, %p113
      %s116 = sadd.s32 %s115, 1
      %p119 = scmp.eq.s32.totalorder %s18, 3
      %p120 = scmp.ne.s32.totalorder %s115, %s117
      %p121 = scmp.eq.s32.totalorder %s18, 0
      %p122 = por %p120, %p121
      %p123 = scmp.ne.s32.totalorder %s115, %s117
      %p124 = scmp.eq.s32.totalorder %s23, 3
      %p125 = por %p123, %p124
      %p126 = scmp.ne.s32.totalorder %s117, %s118
      %p127 = scmp.eq.s32.totalorder %s23, 0
      %p128 = por %p126, %p127
      %p129 = scmp.ne.s32.totalorder %s117, %s118
      %p130 = scmp.eq.s32.totalorder %s24, 3
      %p131 = por %p129, %p130
      %p133 = scmp.ne.s32.totalorder %s118, %s132
      %p134 = scmp.eq.s32.totalorder %s24, 0
      %p135 = por %p133, %p134
      %s137 = sadd.s32 %s136, 1
      %p140 = scmp.eq.s32.totalorder %s18, 3
      %p141 = scmp.ne.s32.totalorder %s136, %s138
      %p142 = scmp.eq.s32.totalorder %s18, 0
      %p143 = por %p141, %p142
      %p144 = scmp.ne.s32.totalorder %s136, %s138
      %p145 = scmp.eq.s32.totalorder %s23, 3
      %p146 = por %p144, %p145
      %p147 = scmp.ne.s32.totalorder %s138, %s139
      %p148 = scmp.eq.s32.totalorder %s23, 0
      %p149 = por %p147, %p148
      %p150 = scmp.ne.s32.totalorder %s138, %s139
      %p151 = scmp.eq.s32.totalorder %s24, 3
      %p152 = por %p150, %p151
      %p154 = scmp.ne.s32.totalorder %s139, %s153
      %p155 = scmp.eq.s32.totalorder %s24, 0
      %p156 = por %p154, %p155
      %s158 = sadd.s32 %s157, 1
      %p161 = scmp.eq.s32.totalorder %s18, 3
      %p162 = scmp.ne.s32.totalorder %s157, %s159
      %p163 = scmp.eq.s32.totalorder %s18, 0
      %p164 = por %p162, %p163
      %p165 = scmp.ne.s32.totalorder %s157, %s159
      %p166 = scmp.eq.s32.totalorder %s23, 3
      %p167 = por %p165, %p166
      %p168 = scmp.ne.s32.totalorder %s159, %s160
      %p169 = scmp.eq.s32.totalorder %s23, 0
      %p170 = por %p168, %p169
      %p171 = scmp.ne.s32.totalorder %s159, %s160
      %p172 = scmp.eq.s32.totalorder %s24, 3
      %p173 = por %p171, %p172
      %p175 = scmp.ne.s32.totalorder %s160, %s174
      %p176 = scmp.eq.s32.totalorder %s24, 0
      %p177 = por %p175, %p176
      %s179 = sadd.s32 %s178, 1
      %p182 = scmp.eq.s32.totalorder %s18, 3
      %p183 = scmp.ne.s32.totalorder %s178, %s180
      %p184 = scmp.eq.s32.totalorder %s18, 0
      %p185 = por %p183, %p184
      %p186 = scmp.ne.s32.totalorder %s178, %s180
      %p187 = scmp.eq.s32.totalorder %s23, 3
      %p188 = por %p186, %p187
      %p189 = scmp.ne.s32.totalorder %s180, %s181
      %p190 = scmp.eq.s32.totalorder %s23, 0
      %p191 = por %p189, %p190
      %p192 = scmp.ne.s32.totalorder %s180, %s181
      %p193 = scmp.eq.s32.totalorder %s24, 3
      %p194 = por %p192, %p193
      %p196 = scmp.ne.s32.totalorder %s181, %s195
      %p197 = scmp.eq.s32.totalorder %s24, 0
      %p198 = por %p196, %p197
      %s200 = sadd.s32 %s199, 1
      %p203 = scmp.eq.s32.totalorder %s18, 3
      %p204 = scmp.ne.s32.totalorder %s199, %s201
      %p205 = scmp.eq.s32.totalorder %s18, 0
      %p206 = por %p204, %p205
      %p207 = scmp.ne.s32.totalorder %s199, %s201
      %p208 = scmp.eq.s32.totalorder %s23, 3
      %p209 = por %p207, %p208
      %p210 = scmp.ne.s32.totalorder %s201, %s202
      %p211 = scmp.eq.s32.totalorder %s23, 0
      %p212 = por %p210, %p211
      %p213 = scmp.ne.s32.totalorder %s201, %s202
      %p214 = scmp.eq.s32.totalorder %s24, 3
      %p215 = por %p213, %p214
      %p217 = scmp.ne.s32.totalorder %s202, %s216
      %p218 = scmp.eq.s32.totalorder %s24, 0
      %p219 = por %p217, %p218
      %s221 = sadd.s32 %s220, 1
      %p224 = scmp.eq.s32.totalorder %s18, 3
      %p225 = scmp.ne.s32.totalorder %s220, %s222
      %p226 = scmp.eq.s32.totalorder %s18, 0
      %p227 = por %p225, %p226
      %p228 = scmp.ne.s32.totalorder %s220, %s222
      %p229 = scmp.eq.s32.totalorder %s23, 3
      %p230 = por %p228, %p229
      %p231 = scmp.ne.s32.totalorder %s222, %s223
      %p232 = scmp.eq.s32.totalorder %s23, 0
      %p233 = por %p231, %p232
      %p234 = scmp.ne.s32.totalorder %s222, %s223
      %p235 = scmp.eq.s32.totalorder %s24, 3
      %p236 = por %p234, %p235
      %p238 = scmp.ne.s32.totalorder %s223, %s237
      %p239 = scmp.eq.s32.totalorder %s24, 0
      %p240 = por %p238, %p239
      %s241 = smul.u32 %s27, %s26
      %s242 = smul.u32 %s36, %s40
      %s243 = ssub.s32 %s25, %s44
      %s244 = ssub.s32 %s241, %s242
      %s245 = sor.u32 %s243, %s244
      %p246 = scmp.eq.s32.totalorder %s245, 0
      %s248 = sadd.s32 %s247, 1
      %s249 = scalar_select %p246, %s247, %s248
      %p252 = pneg %p246
      %p253 = scmp.eq.s32.totalorder %s18, 3
      %p254 = por %p252, %p253
      %p255 = scmp.ne.s32.totalorder %s247, %s250
      %p256 = scmp.eq.s32.totalorder %s18, 0
      %p257 = por %p255, %p256
      %p258 = scmp.ne.s32.totalorder %s247, %s250
      %p259 = scmp.eq.s32.totalorder %s23, 3
      %p260 = por %p258, %p259
      %p261 = scmp.ne.s32.totalorder %s250, %s251
      %p262 = scmp.eq.s32.totalorder %s23, 0
      %p263 = por %p261, %p262
      %p264 = scmp.ne.s32.totalorder %s250, %s251
      %p265 = scmp.eq.s32.totalorder %s24, 3
      %p266 = por %p264, %p265
      %p268 = scmp.ne.s32.totalorder %s251, %s267
      %p269 = scmp.eq.s32.totalorder %s24, 0
      %p270 = por %p268, %p269
      %p271 = scmp.le.s32.totalorder 1, %s18
      %p272 = scmp.lt.s32.totalorder %s18, 5
      %p273 = pnand %p271, %p272
      %p274 = pneg %p273
      // Predicated region
      $region9: #{tpu_custom_call.1} parent=5 // pred_check
        _
      $region10: #{tpu_custom_call.1} parent=5 // pred_check_branch
        %276 = sbr.rel (%p273) target = $region12
      $region11: #{tpu_custom_call.1} parent=5 // pred_region
        %s277 = ssub.s32 %s18, 1
        // Predicated region
        $region13: #{tpu_custom_call.1} parent=11 // pred_check
          %p278 = pneg %p86
        $region14: #{tpu_custom_call.1} parent=11 // pred_check_branch
          %280 = sbr.rel (%p278) target = $region16
        $region15: #{tpu_custom_call.1} parent=11 // pred_region
          _
        $region16: #{tpu_custom_call.1} parent=11 // pred_fallthru
          _
        // Predicated region
        $region17: #{tpu_custom_call.1} parent=11 // pred_check
          %p281 = pneg %p107
        $region18: #{tpu_custom_call.1} parent=11 // pred_check_branch
          %283 = sbr.rel (%p281) target = $region20
        $region19: #{tpu_custom_call.1} parent=11 // pred_region
          _
        $region20: #{tpu_custom_call.1} parent=11 // pred_fallthru
          _
        // Predicated region
        $region21: #{tpu_custom_call.1} parent=11 // pred_check
          %p284 = pneg %p128
        $region22: #{tpu_custom_call.1} parent=11 // pred_check_branch
          %286 = sbr.rel (%p284) target = $region24
        $region23: #{tpu_custom_call.1} parent=11 // pred_region
          _
        $region24: #{tpu_custom_call.1} parent=11 // pred_fallthru
          _
        // Predicated region
        $region25: #{tpu_custom_call.1} parent=11 // pred_check
          %p287 = pneg %p149
        $region26: #{tpu_custom_call.1} parent=11 // pred_check_branch
          %289 = sbr.rel (%p287) target = $region28
        $region27: #{tpu_custom_call.1} parent=11 // pred_region
          _
        $region28: #{tpu_custom_call.1} parent=11 // pred_fallthru
          _
        // Predicated region
        $region29: #{tpu_custom_call.1} parent=11 // pred_check
          %p290 = pneg %p170
        $region30: #{tpu_custom_call.1} parent=11 // pred_check_branch
          %292 = sbr.rel (%p290) target = $region32
        $region31: #{tpu_custom_call.1} parent=11 // pred_region
          _
        $region32: #{tpu_custom_call.1} parent=11 // pred_fallthru
          _
        // Predicated region
        $region33: #{tpu_custom_call.1} parent=11 // pred_check
          %p293 = pneg %p191
        $region34: #{tpu_custom_call.1} parent=11 // pred_check_branch
          %295 = sbr.rel (%p293) target = $region36
        $region35: #{tpu_custom_call.1} parent=11 // pred_region
          _
        $region36: #{tpu_custom_call.1} parent=11 // pred_fallthru
          _
        // Predicated region
        $region37: #{tpu_custom_call.1} parent=11 // pred_check
          %p296 = pneg %p212
        $region38: #{tpu_custom_call.1} parent=11 // pred_check_branch
          %298 = sbr.rel (%p296) target = $region40
        $region39: #{tpu_custom_call.1} parent=11 // pred_region
          _
        $region40: #{tpu_custom_call.1} parent=11 // pred_fallthru
          _
        // Predicated region
        $region41: #{tpu_custom_call.1} parent=11 // pred_check
          %p299 = pneg %p233
        $region42: #{tpu_custom_call.1} parent=11 // pred_check_branch
          %301 = sbr.rel (%p299) target = $region44
        $region43: #{tpu_custom_call.1} parent=11 // pred_region
          _
        $region44: #{tpu_custom_call.1} parent=11 // pred_fallthru
          _
      $region12: #{tpu_custom_call.1} parent=5 // pred_fallthru
        _
      %p302 = scmp.lt.s32.totalorder %s18, 4
      // Predicated region
      $region45: #{tpu_custom_call.1} parent=5 // pred_check
        %p303 = pneg %p302
      $region46: #{tpu_custom_call.1} parent=5 // pred_check_branch
        %305 = sbr.rel (%p303) target = $region48
      $region47: #{tpu_custom_call.1} parent=5 // pred_region
        // Predicated region
        $region49: #{tpu_custom_call.1} parent=47 // pred_check
          %p306 = pneg %p59
        $region50: #{tpu_custom_call.1} parent=47 // pred_check_branch
          %308 = sbr.rel (%p306) target = $region52
        $region51: #{tpu_custom_call.1} parent=47 // pred_region
          %s309 = smul.u32 2, %s27
          %p310 = scmp.lt.s32.totalorder %s25, 1
          %s311 = scalar_select %p310, %s25, 1
          %p312 = scmp.lt.s32.totalorder %s309, 1
          %s313 = scalar_select %p312, %s309, 1
          %s314 = smul.addr %s311, 2
          %s315 = sadd.s32 %s313, %s314
          %s316 = smul.addr %s315, 4
          %s317 = scalar_lea.vmem %s0, %s316
          %s318 = smul.u32 2, %s27
        $region52: #{tpu_custom_call.1} parent=47 // pred_fallthru
          _
      $region48: #{tpu_custom_call.1} parent=5 // pred_fallthru
        _
      %p319 = scmp.le.s32.totalorder 1, %s18
      %p320 = scmp.lt.s32.totalorder %s18, 5
      %p321 = pnand %p319, %p320
      %p322 = pneg %p321
      // Predicated region
      $region53: #{tpu_custom_call.1} parent=5 // pred_check
        _
      $region54: #{tpu_custom_call.1} parent=5 // pred_check_branch
        %324 = sbr.rel (%p321) target = $region56
      $region55: #{tpu_custom_call.1} parent=5 // pred_region
        %s325 = ssub.s32 %s18, 1
        %s326 = smul.u32 2, %s30
        %p327 = scmp.lt.s32.totalorder %s28, 1
        %s328 = scalar_select %p327, %s28, 1
        %p329 = scmp.lt.s32.totalorder %s326, 1
        %s330 = scalar_select %p329, %s326, 1
        %s331 = smul.addr %s328, 2
        %s332 = sadd.s32 %s330, %s331
        %s333 = smul.addr %s332, 4
        %s334 = scalar_lea.vmem %s0, %s333
        %p335 = pneg %p65
        %p336 = pneg %p62
        %p337 = pneg %p86
        %p338 = pneg %p83
        %p339 = pneg %p107
        %p340 = pneg %p104
        %p341 = pneg %p128
        %p342 = pneg %p125
        %p343 = pneg %p149
        %p344 = pneg %p146
        %p345 = pneg %p170
        %p346 = pneg %p167
        %p347 = pneg %p191
        %p348 = pneg %p188
        %p349 = pneg %p212
        %p350 = pneg %p209
        %p351 = pneg %p233
        %p352 = pneg %p230
        %p353 = pneg %p263
        %p354 = pneg %p260
        %s355 = sand.u32 %s250, 1
        %s356 = scalar_lea.sflag [#allocation6], %s355
        %s357 = sand.u32 %s250, 1
        %s358 = smul.addr %s357, 8
        %s359 = scalar_lea.vmem [#allocation5], %s358
        %s360 = smul.u32 2, %s30
        %p361 = scmp.lt.s32.totalorder %s28, 1
        %s362 = scalar_select %p361, %s28, 1
        %p363 = scmp.lt.s32.totalorder %s360, 1
        %s364 = scalar_select %p363, %s360, 1
        %s365 = smul.addr %s362, 2
        %s366 = sadd.s32 %s364, %s365
        %s367 = smul.addr %s366, 4
        %s368 = scalar_lea.vmem %s0, %s367
        %s369 = smul.u32 2, %s30
        %s370 = smul.u32 %s30, %s29
        %s371 = smul.u32 2, %s370
        %p372 = scmp.eq.s32.totalorder %s29, 0
        %p373 = scmp.eq.s32.totalorder %s30, 0
        %p374 = pnand %p372, %p373
        %p375 = pneg %p374
        // Predicated region
        $region57: #{tpu_custom_call.1} parent=55 // pred_check
          _
        $region58: #{tpu_custom_call.1} parent=55 // pred_check_branch
          %377 = sbr.rel (%p374) target = $region60
        $region59: #{tpu_custom_call.1} parent=55 // pred_region
          %vm378 = vcmask 27648
          %379 = vst.msk [vmem:[#allocation2] sm:$0xf] %vm378, 0.0
          %vm380 = vcmask 3072
          %381 = vst.msk [vmem:[#allocation3] sm:$0xf] %vm380, 0.0
          %382 = vst.msk [vmem:[#allocation4] sm:$0xf] %vm380, 0.0
        $region60: #{tpu_custom_call.1} parent=55 // pred_fallthru
          _
        // Predicated region
        $region61: #{tpu_custom_call.1} parent=55 // pred_check
          %p383 = pneg %p372
        $region62: #{tpu_custom_call.1} parent=55 // pred_check_branch
          %385 = sbr.rel (%p383) target = $region64
        $region63: #{tpu_custom_call.1} parent=55 // pred_region
          %v386 = vld [vmem:[%s368] sm:$0xff]
          %v387 = vld [vmem:[%s1] sm:$0xf]
          %v388 = vld [vmem:[%s2] sm:$0xf]
          %390 = vset.pattern.permute.xlu0 0
          %391 = vperm.xlu0 %390, %v388
          %v392 = vpop.permute.xlu0 %391
          %v395 = vcombine.high %v386, %v386
          %vm396 = vcmask 31744
          %v398 = vsel %vm396, %v387, 0
          %vm400 = vcmask 1043456
          %v401 = vsel %vm400, %v386, 0
          %v403 = vsel %vm400, %v395, 0
          %405 = vmatprep.subr.mxu0 0.0
          %406 = vmatpush1.msra.mxu0 0.0
          %407 = vmatprep.subr.mxu0 0.0
          %408 = vmatpush1.msra.mxu0 0.0
          %409 = vmatprep.subr.mxu0 0.0
          %410 = vmatpush1.msra.mxu0 0.0
          %411 = vmatprep.subr.mxu0 0.0
          %412 = vmatpush1.msra.mxu0 0.0
          %413 = vmatprep.subr.mxu0 0.0
          %414 = vmatpush1.msra.mxu0 0.0
          %415 = vmatprep.subr.mxu0 0.0
          %416 = vmatpush1.msra.mxu0 0.0
          %417 = vmatprep.subr.mxu0 0.0
          %418 = vmatpush1.msra.mxu0 0.0
          %419 = vmatprep.subr.mxu0 0.0
          %420 = vmatpush1.msra.mxu0 0.0
          %421 = vmatprep.subr.mxu0 0.0
          %422 = vmatpush1.msra.mxu0 0.0
          %423 = vmatprep.subr.mxu0 0.0
          %424 = vmatpush1.msra.mxu0 0.0
          %425 = vmatprep.subr.mxu0 0.0
          %426 = vmatpush1.msra.mxu0 0.0
          %427 = vmatprep.subr.mxu0 0.0
          %428 = vmatpush1.msra.mxu0 0.0
          %429 = vmatprep.subr.mxu0 0.0
          %430 = vmatpush1.msra.mxu0 0.0
          %431 = vmatprep.subr.mxu0 0.0
          %432 = vmatpush1.msra.mxu0 0.0
          %433 = vmatprep.subr.mxu0 0.0
          %434 = vmatpush1.msra.mxu0 0.0
          %435 = vmatprep.subr.mxu0 %v403
          %436 = vmatpush1.msra.mxu0 %v401
          %437 = vmatprep.subr.mxu0 0.0
          %438 = vmatpush2.msra.mxu0 0.0
          %439 = vmatprep.subr.mxu0 0.0
          %440 = vmatpush2.msra.mxu0 0.0
          %441 = vmatprep.subr.mxu0 0.0
          %442 = vmatpush2.msra.mxu0 0.0
          %443 = vmatprep.subr.mxu0 0.0
          %444 = vmatpush2.msra.mxu0 0.0
          %445 = vmatprep.subr.mxu0 0.0
          %446 = vmatpush2.msra.mxu0 0.0
          %447 = vmatprep.subr.mxu0 0.0
          %448 = vmatpush2.msra.mxu0 0.0
          %449 = vmatprep.subr.mxu0 0.0
          %450 = vmatpush2.msra.mxu0 0.0
          %451 = vmatprep.subr.mxu0 0.0
          %452 = vmatpush2.msra.mxu0 0.0
          %453 = vmatprep.subr.mxu0 0.0
          %454 = vmatpush2.msra.mxu0 0.0
          %455 = vmatprep.subr.mxu0 0.0
          %456 = vmatpush2.msra.mxu0 0.0
          %457 = vmatprep.subr.mxu0 0.0
          %458 = vmatpush2.msra.mxu0 0.0
          %459 = vmatprep.subr.mxu0 0.0
          %460 = vmatpush2.msra.mxu0 0.0
          %461 = vmatprep.subr.mxu0 0.0
          %462 = vmatpush2.msra.mxu0 0.0
          %463 = vmatprep.subr.mxu0 0.0
          %464 = vmatpush2.msra.mxu0 0.0
          %465 = vmatprep.subr.mxu0 0.0
          %466 = vmatpush2.msra.mxu0 0.0
          %467 = vmatprep.subr.mxu0 0.0
          %468 = vmatpush2.msra.mxu0 0.0
          %469 = vmatprep.mubr.f32.mxu0 0.0
          %470 = vmatmul.mubr.f32.gmra.mxu0 %v398
          %v471 = vpop.f32.mrf.mxu0
          %v472 = vadd.f32 %v392, %v471
          %v473 = vpop.f32.mrf.mxu0
          %v474 = vadd.f32 %v392, %v473
          %475 = vdwg.mxu0
          %v476 = vld [vmem:[%s3] sm:$0xf]
          %v477 = vld [vmem:[%s4] sm:$0xf]
          %479 = vset.pattern.permute.xlu0 0
          %480 = vperm.xlu0 %479, %v477
          %v481 = vpop.permute.xlu0 %480
          %v484 = vsel %vm396, %v476, 0
          %486 = vmatprep.subr.mxu0 0.0
          %487 = vmatpush1.msra.mxu0 0.0
          %488 = vmatprep.subr.mxu0 0.0
          %489 = vmatpush1.msra.mxu0 0.0
          %490 = vmatprep.subr.mxu0 0.0
          %491 = vmatpush1.msra.mxu0 0.0
          %492 = vmatprep.subr.mxu0 0.0
          %493 = vmatpush1.msra.mxu0 0.0
          %494 = vmatprep.subr.mxu0 0.0
          %495 = vmatpush1.msra.mxu0 0.0
          %496 = vmatprep.subr.mxu0 0.0
          %497 = vmatpush1.msra.mxu0 0.0
          %498 = vmatprep.subr.mxu0 0.0
          %499 = vmatpush1.msra.mxu0 0.0
          %500 = vmatprep.subr.mxu0 0.0
          %501 = vmatpush1.msra.mxu0 0.0
          %502 = vmatprep.subr.mxu0 0.0
          %503 = vmatpush1.msra.mxu0 0.0
          %504 = vmatprep.subr.mxu0 0.0
          %505 = vmatpush1.msra.mxu0 0.0
          %506 = vmatprep.subr.mxu0 0.0
          %507 = vmatpush1.msra.mxu0 0.0
          %508 = vmatprep.subr.mxu0 0.0
          %509 = vmatpush1.msra.mxu0 0.0
          %510 = vmatprep.subr.mxu0 0.0
          %511 = vmatpush1.msra.mxu0 0.0
          %512 = vmatprep.subr.mxu0 0.0
          %513 = vmatpush1.msra.mxu0 0.0
          %514 = vmatprep.subr.mxu0 0.0
          %515 = vmatpush1.msra.mxu0 0.0
          %516 = vmatprep.subr.mxu0 %v403
          %517 = vmatpush1.msra.mxu0 %v401
          %518 = vmatprep.subr.mxu0 0.0
          %519 = vmatpush2.msra.mxu0 0.0
          %520 = vmatprep.subr.mxu0 0.0
          %521 = vmatpush2.msra.mxu0 0.0
          %522 = vmatprep.subr.mxu0 0.0
          %523 = vmatpush2.msra.mxu0 0.0
          %524 = vmatprep.subr.mxu0 0.0
          %525 = vmatpush2.msra.mxu0 0.0
          %526 = vmatprep.subr.mxu0 0.0
          %527 = vmatpush2.msra.mxu0 0.0
          %528 = vmatprep.subr.mxu0 0.0
          %529 = vmatpush2.msra.mxu0 0.0
          %530 = vmatprep.subr.mxu0 0.0
          %531 = vmatpush2.msra.mxu0 0.0
          %532 = vmatprep.subr.mxu0 0.0
          %533 = vmatpush2.msra.mxu0 0.0
          %534 = vmatprep.subr.mxu0 0.0
          %535 = vmatpush2.msra.mxu0 0.0
          %536 = vmatprep.subr.mxu0 0.0
          %537 = vmatpush2.msra.mxu0 0.0
          %538 = vmatprep.subr.mxu0 0.0
          %539 = vmatpush2.msra.mxu0 0.0
          %540 = vmatprep.subr.mxu0 0.0
          %541 = vmatpush2.msra.mxu0 0.0
          %542 = vmatprep.subr.mxu0 0.0
          %543 = vmatpush2.msra.mxu0 0.0
          %544 = vmatprep.subr.mxu0 0.0
          %545 = vmatpush2.msra.mxu0 0.0
          %546 = vmatprep.subr.mxu0 0.0
          %547 = vmatpush2.msra.mxu0 0.0
          %548 = vmatprep.subr.mxu0 0.0
          %549 = vmatpush2.msra.mxu0 0.0
          %550 = vmatprep.mubr.f32.mxu0 0.0
          %551 = vmatmul.mubr.f32.gmra.mxu0 %v484
          %v552 = vpop.f32.mrf.mxu0
          %v553 = vadd.f32 %v481, %v552
          %v554 = vpop.f32.mrf.mxu0
          %v555 = vadd.f32 %v481, %v554
          %556 = vdwg.mxu0
          %v557 = vld [vmem:[#allocation2] sm:$0xf]
          %558 = vmatprep.subr.mxu0 0.0
          %559 = vmatpush1.xpose.msra.mxu0 0.0
          %560 = vmatprep.subr.mxu0 0.0
          %561 = vmatpush1.xpose.msra.mxu0 0.0
          %562 = vmatprep.subr.mxu0 0.0
          %563 = vmatpush1.xpose.msra.mxu0 0.0
          %564 = vmatprep.subr.mxu0 0.0
          %565 = vmatpush1.xpose.msra.mxu0 0.0
          %566 = vmatprep.subr.mxu0 0.0
          %567 = vmatpush1.xpose.msra.mxu0 0.0
          %568 = vmatprep.subr.mxu0 0.0
          %569 = vmatpush1.xpose.msra.mxu0 0.0
          %570 = vmatprep.subr.mxu0 0.0
          %571 = vmatpush1.xpose.msra.mxu0 0.0
          %572 = vmatprep.subr.mxu0 0.0
          %573 = vmatpush1.xpose.msra.mxu0 0.0
          %574 = vmatprep.subr.mxu0 0.0
          %575 = vmatpush1.xpose.msra.mxu0 0.0
          %576 = vmatprep.subr.mxu0 0.0
          %577 = vmatpush1.xpose.msra.mxu0 0.0
          %578 = vmatprep.subr.mxu0 0.0
          %579 = vmatpush1.xpose.msra.mxu0 0.0
          %580 = vmatprep.subr.mxu0 0.0
          %581 = vmatpush1.xpose.msra.mxu0 0.0
          %582 = vmatprep.subr.mxu0 0.0
          %583 = vmatpush1.xpose.msra.mxu0 0.0
          %584 = vmatprep.subr.mxu0 0.0
          %585 = vmatpush1.xpose.msra.mxu0 0.0
          %586 = vmatprep.subr.mxu0 0.0
          %587 = vmatpush1.xpose.msra.mxu0 0.0
          %588 = vmatprep.subr.mxu0 %v474
          %589 = vmatpush1.xpose.msra.mxu0 %v472
          %590 = vmatprep.subr.mxu0 0.0
          %591 = vmatpush2.xpose.msra.mxu0 0.0
          %592 = vmatprep.subr.mxu0 0.0
          %593 = vmatpush2.xpose.msra.mxu0 0.0
          %594 = vmatprep.subr.mxu0 0.0
          %595 = vmatpush2.xpose.msra.mxu0 0.0
          %596 = vmatprep.subr.mxu0 0.0
          %597 = vmatpush2.xpose.msra.mxu0 0.0
          %598 = vmatprep.subr.mxu0 0.0
          %599 = vmatpush2.xpose.msra.mxu0 0.0
          %600 = vmatprep.subr.mxu0 0.0
          %601 = vmatpush2.xpose.msra.mxu0 0.0
          %602 = vmatprep.subr.mxu0 0.0
          %603 = vmatpush2.xpose.msra.mxu0 0.0
          %604 = vmatprep.subr.mxu0 0.0
          %605 = vmatpush2.xpose.msra.mxu0 0.0
          %606 = vmatprep.subr.mxu0 0.0
          %607 = vmatpush2.xpose.msra.mxu0 0.0
          %608 = vmatprep.subr.mxu0 0.0
          %609 = vmatpush2.xpose.msra.mxu0 0.0
          %610 = vmatprep.subr.mxu0 0.0
          %611 = vmatpush2.xpose.msra.mxu0 0.0
          %612 = vmatprep.subr.mxu0 0.0
          %613 = vmatpush2.xpose.msra.mxu0 0.0
          %614 = vmatprep.subr.mxu0 0.0
          %615 = vmatpush2.xpose.msra.mxu0 0.0
          %616 = vmatprep.subr.mxu0 0.0
          %617 = vmatpush2.xpose.msra.mxu0 0.0
          %618 = vmatprep.subr.mxu0 0.0
          %619 = vmatpush2.xpose.msra.mxu0 0.0
          %620 = vmatprep.subr.mxu0 0.0
          %621 = vmatpush2.xpose.msra.mxu0 0.0
          %622 = vmatprep.mubr.f32.mxu0 %v555
          %623 = vmatmul.mubr.f32.gmra.mxu0 %v553
          %v624 = vpop.f32.mrf.mxu0
          %v625 = vadd.f32 0.0, %v624
          %v626 = vpop.f32.mrf.mxu0
          %627 = vdwg.mxu0
          %v628 = vadd.f32 %v557, %v625
          %vm629 = vcmask 27648
          %630 = vst.msk [vmem:[#allocation2] sm:$0xf] %vm629, %v628
          %v631 = vld [vmem:[#allocation3] sm:$0xf]
          %v633 = vsel %vm400, %v386, 0.0
          %v634 = vsel %vm400, %v395, 0.0
          %v635 = vadd.f32 %v633, %v634
          %636 = vadd.xlane.f32.xlu0 %v635
          %v637 = vpop.xlane.xlu0 %636
          %v638 = vadd.f32 %v631, %v637
          %vm639 = vcmask 3072
          %640 = vst.msk [vmem:[#allocation3] sm:$0xf] %vm639, %v638
          %v641 = vld [vmem:[#allocation4] sm:$0xf]
          %v642 = vmul.f32 %v386, %v386
          %v644 = vcombine.high %v642, %v642
          %v646 = vsel %vm400, %v642, 0.0
          %v647 = vsel %vm400, %v644, 0.0
          %v648 = vadd.f32 %v646, %v647
          %649 = vadd.xlane.f32.xlu0 %v648
          %v650 = vpop.xlane.xlu0 %649
          %v651 = vadd.f32 %v641, %v650
          %652 = vst.msk [vmem:[#allocation4] sm:$0xf] %vm639, %v651
        $region64: #{tpu_custom_call.1} parent=55 // pred_fallthru
          _
        // Predicated region
        $region65: #{tpu_custom_call.1} parent=55 // pred_check
          _
        $region66: #{tpu_custom_call.1} parent=55 // pred_check_branch
          %654 = sbr.rel (%p374) target = $region68
        $region67: #{tpu_custom_call.1} parent=55 // pred_region
          %v655 = vld [vmem:[#allocation3] sm:$0xf]
          %v656 = vld [vmem:[#allocation4] sm:$0xf]
          %v657 = vmul.f32 %v655, 0.00390625
          %v658 = vmul.f32 %v657, 256.0
          %v659 = vmul.f32 %v658, %v657
          %v660 = vsub.f32 %v656, %v659
          %v661 = vmax.f32 %v660, 0.0
          %v662 = vrcp.pop 255.0
          %v663 = vmul.f32 %v661, %v662
          %vm664 = vcmask 3072
          %665 = vst.msk [vmem:[#allocation3] sm:$0xf] %vm664, %v657
          %v666 = vadd.f32 %v663, 1e-05
          %v667 = vrsqrt.pop %v666
          %668 = vst.msk [vmem:[#allocation4] sm:$0xf] %vm664, %v667
          %v669 = vld [vmem:[#allocation2] sm:$0xf]
          %vm670 = vcmask 27648
          %v671 = vsel %vm670, %v669, -inf
          %v672 = vrot.slane %v671, 4
          %v673 = vmax.f32 %v671, %v672
          %v674 = vrot.slane %v673, 2
          %v675 = vmax.f32 %v673, %v674
          %v676 = vrot.slane %v675, 1
          %v677 = vmax.f32 %v675, %v676
          %v678 = vsub.f32 %v669, %v677
          %v679 = vmul.f32 %v678, 1.442695
          %v680 = vpow.pop %v679
          %v681 = vsel %vm670, %v680, 0.0
          %v682 = vrot.slane %v681, 4
          %v683 = vadd.f32 %v681, %v682
          %v684 = vrot.slane %v683, 2
          %v685 = vadd.f32 %v683, %v684
          %v686 = vrot.slane %v685, 1
          %v687 = vadd.f32 %v685, %v686
          %v688 = vrcp.pop %v687
          %v689 = vmul.f32 %v680, %v688
          %690 = vst.msk [vmem:[#allocation2] sm:$0xf] %vm670, %v689
        $region68: #{tpu_custom_call.1} parent=55 // pred_fallthru
          _
        %p691 = scmp.eq.s32.totalorder %s29, 1
        // Predicated region
        $region69: #{tpu_custom_call.1} parent=55 // pred_check
          %p692 = pneg %p691
        $region70: #{tpu_custom_call.1} parent=55 // pred_check_branch
          %694 = sbr.rel (%p692) target = $region72
        $region71: #{tpu_custom_call.1} parent=55 // pred_region
          %v695 = vld [vmem:[%s368] sm:$0xff]
          %v696 = vld [vmem:[#allocation3] sm:$0xf]
          %698 = vset.pattern.permute.xlu0 0
          %699 = vperm.xlu0 %698, %v696
          %v700 = vpop.permute.xlu0 %699
          %v702 = vunpack.c.l.s4 839922192
          %v703 = vunpack.c.0.s8 %v702
          %v704 = vlaneseq
          %v705 = vshrl.u32 %v704, 7
          %v706 = vsub.s32 %v703, %v705
          %v707 = vrot.slane %v700, %v706
          %v709 = vsub.f32 %v695, %v707
          %v710 = vld [vmem:[#allocation4] sm:$0xf]
          %712 = vset.pattern.permute.xlu0 0
          %713 = vperm.xlu0 %712, %v710
          %v714 = vpop.permute.xlu0 %713
          %v716 = vunpack.c.l.s4 839922192
          %v717 = vunpack.c.0.s8 %v716
          %v718 = vlaneseq
          %v719 = vshrl.u32 %v718, 7
          %v720 = vsub.s32 %v717, %v719
          %v721 = vrot.slane %v714, %v720
          %v723 = vmul.f32 %v709, %v721
          %v724 = vld [vmem:[%s5] sm:$0xf]
          %v725 = vld [vmem:[%s6] sm:$0xf]
          %727 = vset.pattern.permute.xlu0 0
          %728 = vperm.xlu0 %727, %v725
          %v729 = vpop.permute.xlu0 %728
          %v732 = vcombine.high %v723, %v723
          %vm733 = vcmask 31744
          %v735 = vsel %vm733, %v724, 0
          %vm737 = vcmask 1043456
          %v738 = vsel %vm737, %v723, 0
          %v740 = vsel %vm737, %v732, 0
          %742 = vmatprep.subr.mxu0 0.0
          %743 = vmatpush1.msra.mxu0 0.0
          %744 = vmatprep.subr.mxu0 0.0
          %745 = vmatpush1.msra.mxu0 0.0
          %746 = vmatprep.subr.mxu0 0.0
          %747 = vmatpush1.msra.mxu0 0.0
          %748 = vmatprep.subr.mxu0 0.0
          %749 = vmatpush1.msra.mxu0 0.0
          %750 = vmatprep.subr.mxu0 0.0
          %751 = vmatpush1.msra.mxu0 0.0
          %752 = vmatprep.subr.mxu0 0.0
          %753 = vmatpush1.msra.mxu0 0.0
          %754 = vmatprep.subr.mxu0 0.0
          %755 = vmatpush1.msra.mxu0 0.0
          %756 = vmatprep.subr.mxu0 0.0
          %757 = vmatpush1.msra.mxu0 0.0
          %758 = vmatprep.subr.mxu0 0.0
          %759 = vmatpush1.msra.mxu0 0.0
          %760 = vmatprep.subr.mxu0 0.0
          %761 = vmatpush1.msra.mxu0 0.0
          %762 = vmatprep.subr.mxu0 0.0
          %763 = vmatpush1.msra.mxu0 0.0
          %764 = vmatprep.subr.mxu0 0.0
          %765 = vmatpush1.msra.mxu0 0.0
          %766 = vmatprep.subr.mxu0 0.0
          %767 = vmatpush1.msra.mxu0 0.0
          %768 = vmatprep.subr.mxu0 0.0
          %769 = vmatpush1.msra.mxu0 0.0
          %770 = vmatprep.subr.mxu0 0.0
          %771 = vmatpush1.msra.mxu0 0.0
          %772 = vmatprep.subr.mxu0 %v740
          %773 = vmatpush1.msra.mxu0 %v738
          %774 = vmatprep.subr.mxu0 0.0
          %775 = vmatpush2.msra.mxu0 0.0
          %776 = vmatprep.subr.mxu0 0.0
          %777 = vmatpush2.msra.mxu0 0.0
          %778 = vmatprep.subr.mxu0 0.0
          %779 = vmatpush2.msra.mxu0 0.0
          %780 = vmatprep.subr.mxu0 0.0
          %781 = vmatpush2.msra.mxu0 0.0
          %782 = vmatprep.subr.mxu0 0.0
          %783 = vmatpush2.msra.mxu0 0.0
          %784 = vmatprep.subr.mxu0 0.0
          %785 = vmatpush2.msra.mxu0 0.0
          %786 = vmatprep.subr.mxu0 0.0
          %787 = vmatpush2.msra.mxu0 0.0
          %788 = vmatprep.subr.mxu0 0.0
          %789 = vmatpush2.msra.mxu0 0.0
          %790 = vmatprep.subr.mxu0 0.0
          %791 = vmatpush2.msra.mxu0 0.0
          %792 = vmatprep.subr.mxu0 0.0
          %793 = vmatpush2.msra.mxu0 0.0
          %794 = vmatprep.subr.mxu0 0.0
          %795 = vmatpush2.msra.mxu0 0.0
          %796 = vmatprep.subr.mxu0 0.0
          %797 = vmatpush2.msra.mxu0 0.0
          %798 = vmatprep.subr.mxu0 0.0
          %799 = vmatpush2.msra.mxu0 0.0
          %800 = vmatprep.subr.mxu0 0.0
          %801 = vmatpush2.msra.mxu0 0.0
          %802 = vmatprep.subr.mxu0 0.0
          %803 = vmatpush2.msra.mxu0 0.0
          %804 = vmatprep.subr.mxu0 0.0
          %805 = vmatpush2.msra.mxu0 0.0
          %806 = vmatprep.mubr.f32.mxu0 0.0
          %807 = vmatmul.mubr.f32.gmra.mxu0 %v735
          %v808 = vpop.f32.mrf.mxu0
          %v809 = vadd.f32 %v729, %v808
          %v810 = vpop.f32.mrf.mxu0
          %v811 = vadd.f32 %v729, %v810
          %812 = vdwg.mxu0
          %v813 = vld [vmem:[#allocation2] sm:$0xf]
          %v815 = vsel %vm733, %v813, 0
          %v818 = vsel %vm737, %v809, 0
          %v821 = vsel %vm737, %v811, 0
          %823 = vmatprep.subr.mxu0 0.0
          %824 = vmatpush1.msra.mxu0 0.0
          %825 = vmatprep.subr.mxu0 0.0
          %826 = vmatpush1.msra.mxu0 0.0
          %827 = vmatprep.subr.mxu0 0.0
          %828 = vmatpush1.msra.mxu0 0.0
          %829 = vmatprep.subr.mxu0 0.0
          %830 = vmatpush1.msra.mxu0 0.0
          %831 = vmatprep.subr.mxu0 0.0
          %832 = vmatpush1.msra.mxu0 0.0
          %833 = vmatprep.subr.mxu0 0.0
          %834 = vmatpush1.msra.mxu0 0.0
          %835 = vmatprep.subr.mxu0 0.0
          %836 = vmatpush1.msra.mxu0 0.0
          %837 = vmatprep.subr.mxu0 0.0
          %838 = vmatpush1.msra.mxu0 0.0
          %839 = vmatprep.subr.mxu0 0.0
          %840 = vmatpush1.msra.mxu0 0.0
          %841 = vmatprep.subr.mxu0 0.0
          %842 = vmatpush1.msra.mxu0 0.0
          %843 = vmatprep.subr.mxu0 0.0
          %844 = vmatpush1.msra.mxu0 0.0
          %845 = vmatprep.subr.mxu0 0.0
          %846 = vmatpush1.msra.mxu0 0.0
          %847 = vmatprep.subr.mxu0 0.0
          %848 = vmatpush1.msra.mxu0 0.0
          %849 = vmatprep.subr.mxu0 0.0
          %850 = vmatpush1.msra.mxu0 0.0
          %851 = vmatprep.subr.mxu0 0.0
          %852 = vmatpush1.msra.mxu0 0.0
          %853 = vmatprep.subr.mxu0 %v821
          %854 = vmatpush1.msra.mxu0 %v818
          %855 = vmatprep.subr.mxu0 0.0
          %856 = vmatpush2.msra.mxu0 0.0
          %857 = vmatprep.subr.mxu0 0.0
          %858 = vmatpush2.msra.mxu0 0.0
          %859 = vmatprep.subr.mxu0 0.0
          %860 = vmatpush2.msra.mxu0 0.0
          %861 = vmatprep.subr.mxu0 0.0
          %862 = vmatpush2.msra.mxu0 0.0
          %863 = vmatprep.subr.mxu0 0.0
          %864 = vmatpush2.msra.mxu0 0.0
          %865 = vmatprep.subr.mxu0 0.0
          %866 = vmatpush2.msra.mxu0 0.0
          %867 = vmatprep.subr.mxu0 0.0
          %868 = vmatpush2.msra.mxu0 0.0
          %869 = vmatprep.subr.mxu0 0.0
          %870 = vmatpush2.msra.mxu0 0.0
          %871 = vmatprep.subr.mxu0 0.0
          %872 = vmatpush2.msra.mxu0 0.0
          %873 = vmatprep.subr.mxu0 0.0
          %874 = vmatpush2.msra.mxu0 0.0
          %875 = vmatprep.subr.mxu0 0.0
          %876 = vmatpush2.msra.mxu0 0.0
          %877 = vmatprep.subr.mxu0 0.0
          %878 = vmatpush2.msra.mxu0 0.0
          %879 = vmatprep.subr.mxu0 0.0
          %880 = vmatpush2.msra.mxu0 0.0
          %881 = vmatprep.subr.mxu0 0.0
          %882 = vmatpush2.msra.mxu0 0.0
          %883 = vmatprep.subr.mxu0 0.0
          %884 = vmatpush2.msra.mxu0 0.0
          %885 = vmatprep.subr.mxu0 0.0
          %886 = vmatpush2.msra.mxu0 0.0
          %887 = vmatprep.mubr.f32.mxu0 0.0
          %888 = vmatmul.mubr.f32.gmra.mxu0 %v815
          %v889 = vpop.f32.mrf.mxu0
          %v890 = vadd.f32 0.0, %v889
          %v891 = vpop.f32.mrf.mxu0
          %v892 = vadd.f32 0.0, %v891
          %893 = vdwg.mxu0
          %v894 = vld [vmem:[%s7] sm:$0xf]
          %v895 = vld [vmem:[%s8] sm:$0xf]
          %897 = vset.pattern.permute.xlu0 0
          %898 = vperm.xlu0 %897, %v895
          %v899 = vpop.permute.xlu0 %898
          %v902 = vsel %vm733, %v894, 0
          %v905 = vsel %vm737, %v890, 0
          %v908 = vsel %vm737, %v892, 0
          %910 = vmatprep.subr.mxu0 0.0
          %911 = vmatpush1.msra.mxu0 0.0
          %912 = vmatprep.subr.mxu0 0.0
          %913 = vmatpush1.msra.mxu0 0.0
          %914 = vmatprep.subr.mxu0 0.0
          %915 = vmatpush1.msra.mxu0 0.0
          %916 = vmatprep.subr.mxu0 0.0
          %917 = vmatpush1.msra.mxu0 0.0
          %918 = vmatprep.subr.mxu0 0.0
          %919 = vmatpush1.msra.mxu0 0.0
          %920 = vmatprep.subr.mxu0 0.0
          %921 = vmatpush1.msra.mxu0 0.0
          %922 = vmatprep.subr.mxu0 0.0
          %923 = vmatpush1.msra.mxu0 0.0
          %924 = vmatprep.subr.mxu0 0.0
          %925 = vmatpush1.msra.mxu0 0.0
          %926 = vmatprep.subr.mxu0 0.0
          %927 = vmatpush1.msra.mxu0 0.0
          %928 = vmatprep.subr.mxu0 0.0
          %929 = vmatpush1.msra.mxu0 0.0
          %930 = vmatprep.subr.mxu0 0.0
          %931 = vmatpush1.msra.mxu0 0.0
          %932 = vmatprep.subr.mxu0 0.0
          %933 = vmatpush1.msra.mxu0 0.0
          %934 = vmatprep.subr.mxu0 0.0
          %935 = vmatpush1.msra.mxu0 0.0
          %936 = vmatprep.subr.mxu0 0.0
          %937 = vmatpush1.msra.mxu0 0.0
          %938 = vmatprep.subr.mxu0 0.0
          %939 = vmatpush1.msra.mxu0 0.0
          %940 = vmatprep.subr.mxu0 %v908
          %941 = vmatpush1.msra.mxu0 %v905
          %942 = vmatprep.subr.mxu0 0.0
          %943 = vmatpush2.msra.mxu0 0.0
          %944 = vmatprep.subr.mxu0 0.0
          %945 = vmatpush2.msra.mxu0 0.0
          %946 = vmatprep.subr.mxu0 0.0
          %947 = vmatpush2.msra.mxu0 0.0
          %948 = vmatprep.subr.mxu0 0.0
          %949 = vmatpush2.msra.mxu0 0.0
          %950 = vmatprep.subr.mxu0 0.0
          %951 = vmatpush2.msra.mxu0 0.0
          %952 = vmatprep.subr.mxu0 0.0
          %953 = vmatpush2.msra.mxu0 0.0
          %954 = vmatprep.subr.mxu0 0.0
          %955 = vmatpush2.msra.mxu0 0.0
          %956 = vmatprep.subr.mxu0 0.0
          %957 = vmatpush2.msra.mxu0 0.0
          %958 = vmatprep.subr.mxu0 0.0
          %959 = vmatpush2.msra.mxu0 0.0
          %960 = vmatprep.subr.mxu0 0.0
          %961 = vmatpush2.msra.mxu0 0.0
          %962 = vmatprep.subr.mxu0 0.0
          %963 = vmatpush2.msra.mxu0 0.0
          %964 = vmatprep.subr.mxu0 0.0
          %965 = vmatpush2.msra.mxu0 0.0
          %966 = vmatprep.subr.mxu0 0.0
          %967 = vmatpush2.msra.mxu0 0.0
          %968 = vmatprep.subr.mxu0 0.0
          %969 = vmatpush2.msra.mxu0 0.0
          %970 = vmatprep.subr.mxu0 0.0
          %971 = vmatpush2.msra.mxu0 0.0
          %972 = vmatprep.subr.mxu0 0.0
          %973 = vmatpush2.msra.mxu0 0.0
          %974 = vmatprep.mubr.f32.mxu0 0.0
          %975 = vmatmul.mubr.f32.gmra.mxu0 %v902
          %v976 = vpop.f32.mrf.mxu0
          %v977 = vadd.f32 %v899, %v976
          %v978 = vpop.f32.mrf.mxu0
          %v979 = vadd.f32 %v899, %v978
          %980 = vdwg.mxu0
          %v982 = vcombine.high %v695, %v695
          %v984 = vadd.f32 %v977, %v695
          %v985 = vadd.f32 %v979, %v982
          %v988 = vcombine.low %v984, %v985
          %990 = vst [vmem:[%s359] sm:$0xff] %v988
        $region72: #{tpu_custom_call.1} parent=55 // pred_fallthru
          _
        %s991 = sand.u32 %s250, 1
        %s992 = scalar_lea.sflag [#allocation6], %s991
        %s993 = sand.u32 %s250, 1
        %s994 = smul.addr %s993, 8
        %s995 = scalar_lea.vmem [#allocation5], %s994
        // Predicated region
        $region73: #{tpu_custom_call.1} parent=55 // pred_check
          %p996 = pneg %p260
        $region74: #{tpu_custom_call.1} parent=55 // pred_check_branch
          %998 = sbr.rel (%p996) target = $region76
        $region75: #{tpu_custom_call.1} parent=55 // pred_region
          %s999 = smul.u32 %s30, %s29
          %s1000 = smul.u32 2, %s999
          %s1002 = ssub.s32 128, 128
          %1003 = vsyncadd %s992, %s1002
          %s1004 = smul.addr %s28, 2
          %s1005 = sadd.s32 %s1000, %s1004
          %s1006 = smul.addr %s1005, 64
          %s1007 = scalar_lea.hbm %s9, %s1006
          %s1009 = sshll.u32 %s995, 4
          %s1010 = int_to_ptr.vmem [resolvable:$true] %s1009
          %1012 = dma.vmem_to_hbm [thread:$0]  %s1010, 128, %s1007, %s992
        $region76: #{tpu_custom_call.1} parent=55 // pred_fallthru
          _
      $region56: #{tpu_custom_call.1} parent=5 // pred_fallthru
        _
      %p1013 = scmp.le.s32.totalorder 2, %s18
      // Predicated region
      $region77: #{tpu_custom_call.1} parent=5 // pred_check
        %p1014 = pneg %p1013
      $region78: #{tpu_custom_call.1} parent=5 // pred_check_branch
        %1016 = sbr.rel (%p1014) target = $region80
      $region79: #{tpu_custom_call.1} parent=5 // pred_region
        %s1017 = ssub.s32 %s18, 2
        // Predicated region
        $region81: #{tpu_custom_call.1} parent=79 // pred_check
          %p1018 = pneg %p266
        $region82: #{tpu_custom_call.1} parent=79 // pred_check_branch
          %1020 = sbr.rel (%p1018) target = $region84
        $region83: #{tpu_custom_call.1} parent=79 // pred_region
          %s1021 = sand.u32 %s251, 1
          %s1022 = scalar_lea.sflag [#allocation6], %s1021
          %s1023 = sand.u32 %s251, 1
          %s1024 = smul.addr %s1023, 8
          %s1025 = scalar_lea.vmem [#allocation5], %s1024
          %1026 = dma.done %s1022, 128
        $region84: #{tpu_custom_call.1} parent=79 // pred_fallthru
          _
      $region80: #{tpu_custom_call.1} parent=5 // pred_fallthru
        _
    $region6: #{tpu_custom_call.1} parent=1 // loop_footer
      %s22 = sadd.s32 1, %s18
    $region7: #{tpu_custom_call.1} parent=1 // loop_footer_branch
      %17 = sbr.rel target = $region3
    $region8: #{tpu_custom_call.1} parent=1 // loop_exit
      _
    %1027 = vsyncpa [#allocation6], 1
    %s1028 = scalar_lea.sflag [#allocation6], 1
    %1029 = vsyncpa %s1028, 1

</llo_original>
